<compile_context>
chip_gen: v5e
topology: v5e:2x2
jax: 0.10.0
libtpu: 0.0.40
codegen_flags: <defaults>
</compile_context>

<pallas_src>
import functools

import jax
import jax.numpy as jnp
from jax import lax
from jax.experimental import pallas as pl
from jax.experimental.pallas import tpu as pltpu

EPS = 1e-5


def fc_block_kernel(x_ref, w_ref, gamma_ref, beta_ref, alpha_ref, o_ref,
                    *acc_scratch, x_resident: bool, tk: int):
    # Grid = (j over out_dim tiles, k over in_dim tiles); k is the reduction axis.
    # x_ref:     (N, in_dim_p) if x_resident else (N, TK)
    # w_ref:     (TN, TK)    PyTorch layout (out_dim, in_dim) tile
    # gamma_ref: (1, TN)     BatchNorm1d weight tile
    # beta_ref:  (1, TN)     BatchNorm1d bias tile
    # alpha_ref: (1,) SMEM   PReLU single shared parameter
    # o_ref:     (N, TN)
    # acc_scratch: () when o_ref is f32 (accumulate in place), else ((N, TN) f32,)
    acc_ref = acc_scratch[0] if acc_scratch else o_ref
    k = pl.program_id(1)

    if x_resident:
        # x stays resident in VMEM for the whole grid; slice the aligned K tile.
        xk = x_ref[:, pl.ds(pl.multiple_of(k * tk, 128), tk)]
    else:
        xk = x_ref[...]
    wk = w_ref[...]
    if xk.dtype != wk.dtype:
        xk = xk.astype(wk.dtype)  # e.g. bf16 weight streaming

    # Linear, bias dropped (cancels under training-mode BatchNorm).  Contract dim 1 of
    # both operands -> no transposed HBM copy of w; f32 accumulation on the MXU.
    partial = lax.dot_general(
        xk, wk,
        dimension_numbers=(((1,), (1,)), ((), ())),
        preferred_element_type=jnp.float32,
    )

    @pl.when(k == 0)
    def _():
        acc_ref[...] = partial          # direct store: no zero-fill + add on step 0

    @pl.when(k != 0)
    def _():
        acc_ref[...] += partial

    @pl.when(k == pl.num_programs(1) - 1)
    def _():
        y = acc_ref[...]                                     # (N, TN) f32
        inv_n = 1.0 / y.shape[0]
        # One-pass batch stats (biased variance, matches BN training semantics).
        mean = jnp.sum(y, axis=0, keepdims=True) * inv_n     # (1, TN)
        ex2 = jnp.sum(y * y, axis=0, keepdims=True) * inv_n  # (1, TN)
        var = jnp.maximum(ex2 - mean * mean, 0.0)            # cancellation guard
        # Fused BN affine: one mul + one add per element on the (N, TN) tile.
        scale = gamma_ref[...] * lax.rsqrt(var + EPS)        # (1, TN)
        shift = beta_ref[...] - scale * mean                 # (1, TN)
        z = y * scale + shift
        # PReLU with a single shared parameter (scalar from SMEM).
        alpha = alpha_ref[0]
        # TODO(synk): for very large N, apply scale/shift/PReLU in row chunks to cut
        # epilogue vreg pressure; negligible at small N.
        o_ref[...] = jnp.where(z > 0, z, alpha * z).astype(o_ref.dtype)


def _round_up(v, m):
    return ((v + m - 1) // m) * m


def _vmem_budget_bytes():
    """~80% of per-core VMEM capacity; conservative 64 MiB (v7x per-TC) fallback."""
    cap = None
    try:
        info = pltpu.get_tpu_info()
        cap = getattr(info, "vmem_capacity_bytes", None)
    except Exception:
        cap = None
    if not cap:
        cap = 64 * 1024 * 1024
    return int(cap * 0.8)


def _choose_tiles(n, in_dim, out_dim, x_bytes, w_bytes, out_bytes, budget):
    """Returns (tn, tk, out_dim_p, in_dim_p, x_resident)."""
    in128 = _round_up(in_dim, 128)
    out128 = _round_up(out_dim, 128)

    # TN: lane-dense, capped at 512; keep >= 2 j blocks when out_dim allows so the
    # "parallel" j axis can be load-balanced across v7x's 2 TensorCores.
    tn = min(512, out128)
    if out128 // tn < 2 and out128 >= 256:
        tn = max(128, _round_up(out128 // 2, 128))
    out_dim_p = _round_up(out_dim, tn)

    # Footprint independent of TK: acc scratch (only for non-f32 out), double-buffered
    # output, gamma/beta tiles.
    acc_bytes = 0 if out_bytes == 4 else n * tn * 4
    fixed = acc_bytes + 2 * n * tn * out_bytes + 4 * tn * 4

    # TK: largest lane-dense candidate that fits the budget; prefer keeping x fully
    # resident (removes (grid_j - 1) redundant HBM re-reads of x).
    best_tiled = None
    for tk in (2048, 1024, 512, 256, 128):
        if tk > in128:
            continue
        in_dim_p = _round_up(in_dim, tk)
        w_buf = 2 * tn * tk * w_bytes
        x_resident_cost = 2 * n * in_dim_p * x_bytes   # conservative (double-buffered)
        x_tiled_cost = 2 * n * tk * x_bytes
        if fixed + w_buf + x_resident_cost <= budget:
            return tn, tk, out_dim_p, in_dim_p, True
        if best_tiled is None and fixed + w_buf + x_tiled_cost <= budget:
            best_tiled = (tn, tk, out_dim_p, in_dim_p, False)
    if best_tiled is not None:
        return best_tiled
    # TODO(synk): very large N needs an N-tiled two-pass (Welford-merge) BN path; fall
    # back to the smallest tiles here.
    tk = min(128, in128)
    return tn, tk, out_dim_p, _round_up(in_dim, tk), False


def fc_block(x, w, b, gamma, beta, alpha, *, weight_dtype=None):
    """x: (N, in_dim); w: (out_dim, in_dim) PyTorch layout; returns (N, out_dim) in x.dtype.

    `b` (Linear bias) is accepted for interface parity with nn.Linear but is unused:
    training-mode BatchNorm subtracts the per-feature batch mean, so the additive
    per-feature bias cancels exactly (up to fp rounding).

    weight_dtype: optionally stream the weight in a narrower dtype (e.g. jnp.bfloat16)
    to halve W HBM traffic; f32 MXU accumulation is kept either way.
    """
    del b  # mathematically a no-op under training-mode BatchNorm
    # TODO(synk): eval-mode BatchNorm (running stats) is not implemented; in that mode
    # the bias would not cancel and stats must come from running_mean / running_var.
    n, in_dim = x.shape
    out_dim = w.shape[0]

    if weight_dtype is not None:
        w = w.astype(weight_dtype)

    out_dtype = x.dtype
    budget = _vmem_budget_bytes()
    tn, tk, out_dim_p, in_dim_p, x_resident = _choose_tiles(
        n, in_dim, out_dim,
        x.dtype.itemsize, w.dtype.itemsize, jnp.dtype(out_dtype).itemsize, budget)

    # Zero-pad narrow dims (padded K contributes nothing; padded out features are
    # sliced off after the call).
    if in_dim_p != in_dim:
        x = jnp.pad(x, ((0, 0), (0, in_dim_p - in_dim)))
    if in_dim_p != in_dim or out_dim_p != out_dim:
        w = jnp.pad(w, ((0, out_dim_p - out_dim), (0, in_dim_p - in_dim)))
    if out_dim_p != out_dim:
        gamma = jnp.pad(gamma, (0, out_dim_p - out_dim))
        beta = jnp.pad(beta, (0, out_dim_p - out_dim))

    gamma2 = gamma.reshape(1, out_dim_p).astype(jnp.float32)
    beta2 = beta.reshape(1, out_dim_p).astype(jnp.float32)
    alpha1 = jnp.asarray(alpha, dtype=jnp.float32).reshape(1)

    grid = (out_dim_p // tn, in_dim_p // tk)

    if x_resident:
        # Block index never changes -> Pallas DMAs x into VMEM once for the whole grid.
        x_spec = pl.BlockSpec((n, in_dim_p), lambda j, k: (0, 0))
    else:
        x_spec = pl.BlockSpec((n, tk), lambda j, k: (0, k))

    scratch_shapes = []
    if jnp.dtype(out_dtype) != jnp.float32:
        scratch_shapes.append(pltpu.VMEM((n, tn), jnp.float32))

    kernel = functools.partial(fc_block_kernel, x_resident=x_resident, tk=tk)

    out = pl.pallas_call(
        kernel,
        out_shape=jax.ShapeDtypeStruct((n, out_dim_p), out_dtype),
        grid_spec=pltpu.PrefetchScalarGridSpec(
            num_scalar_prefetch=0,
            grid=grid,
            in_specs=[
                x_spec,                                                # x
                pl.BlockSpec((tn, tk), lambda j, k: (j, k)),           # w (out, K) tile
                pl.BlockSpec((1, tn), lambda j, k: (0, j)),            # gamma
                pl.BlockSpec((1, tn), lambda j, k: (0, j)),            # beta
                pl.BlockSpec(memory_space=pltpu.MemorySpace.SMEM),     # alpha scalar
            ],
            out_specs=pl.BlockSpec((n, tn), lambda j, k: (0, j)),
            scratch_shapes=scratch_shapes,
        ),
        compiler_params=pltpu.CompilerParams(
            dimension_semantics=("parallel", "arbitrary"),
            vmem_limit_bytes=budget,
        ),
    )(x, w, gamma2, beta2, alpha1)

    if out_dim_p != out_dim:
        out = out[:, :out_dim]
    return out


def fc_block_ref(x, w, b, gamma, beta, alpha):
    y = x @ w.T + b
    mean = jnp.mean(y, axis=0, keepdims=True)
    var = jnp.mean((y - mean) ** 2, axis=0, keepdims=True)
    z = gamma * (y - mean) / jnp.sqrt(var + EPS) + beta
    return jnp.where(z > 0, z, alpha * z)


if __name__ == "__main__":
    key = jax.random.PRNGKey(0)
    k_x, k_w, k_b = jax.random.split(key, 3)

    N, IN_DIM, OUT_DIM = 8, 32, 16

    x = jax.random.normal(k_x, (N, IN_DIM), dtype=jnp.float32)

    # Deterministic parameter init (shapes match nn.Linear / BatchNorm1d / PReLU defaults).
    bound = 1.0 / jnp.sqrt(IN_DIM)
    w = jax.random.uniform(k_w, (OUT_DIM, IN_DIM), minval=-bound, maxval=bound,
                           dtype=jnp.float32)
    b = jax.random.uniform(k_b, (OUT_DIM,), minval=-bound, maxval=bound,
                           dtype=jnp.float32)
    gamma = jnp.ones((OUT_DIM,), dtype=jnp.float32)   # BatchNorm1d weight init
    beta = jnp.zeros((OUT_DIM,), dtype=jnp.float32)   # BatchNorm1d bias init
    alpha = jnp.array(0.25, dtype=jnp.float32)        # PReLU default init

    out = fc_block(x, w, b, gamma, beta, alpha)
    out = jax.block_until_ready(out)

    ref = fc_block_ref(x, w, b, gamma, beta, alpha)
    assert out.shape == (N, OUT_DIM)
    assert jnp.allclose(out, ref, atol=1e-4, rtol=1e-4), "mismatch vs reference"

    print("KERNEL_OK")
</pallas_src>

<mosaic_0001>
module attributes {stable_mosaic.version = 11 : i64} {
  func.func @fc_block_kernel(%arg0: i32, %arg1: i32, %arg2: memref<8x128xf32, #tpu.memory_space<vmem>>, %arg3: memref<128x128xf32, #tpu.memory_space<vmem>>, %arg4: memref<1x128xf32, #tpu.memory_space<vmem>>, %arg5: memref<1x128xf32, #tpu.memory_space<vmem>>, %arg6: memref<1xf32, #tpu.memory_space<smem>>, %arg7: memref<8x128xf32, #tpu.memory_space<vmem>>) attributes {dimension_semantics = [#tpu.dimension_semantics<parallel>, #tpu.dimension_semantics<arbitrary>], iteration_bounds = array<i64: 1, 1>, scalar_prefetch = 0 : i64, scratch_operands = 0 : i64, tpu.core_type = #tpu.core_type<tc>, window_params = [{pipeline_mode = #tpu.pipeline_mode<synchronous>, transform_indices = @transform_0, window_bounds = array<i64: 8, 128>}, {transform_indices = @transform_1, window_bounds = array<i64: 128, 128>}, {transform_indices = @transform_2, window_bounds = array<i64: 1, 128>}, {transform_indices = @transform_3, window_bounds = array<i64: 1, 128>}, {transform_indices = @transform_4, window_bounds = array<i64: 1>}, {transform_indices = @transform_5, window_bounds = array<i64: 8, 128>}]} {
    %c128_i32 = arith.constant 128 : i32
    %0 = arith.muli %arg1, %c128_i32 : i32
    %1 = tpu.assume_multiple %0, 128 : i32
    %c0 = arith.constant 0 : index
    %2 = arith.index_cast %1 : i32 to index
    %3 = vector.load %arg2[%c0, %2] : memref<8x128xf32, #tpu.memory_space<vmem>>, vector<8x128xf32>
    %c0_0 = arith.constant 0 : index
    %c0_1 = arith.constant 0 : index
    %4 = vector.load %arg3[%c0_0, %c0_1] : memref<128x128xf32, #tpu.memory_space<vmem>>, vector<128x128xf32>
    %cst = arith.constant dense<0.000000e+00> : vector<8x128xf32>
    %5 = tpu.matmul %3, %4, %cst {dimension_numbers = #tpu.dot_dimension_numbers<[1], [1], [0], [0], [0, 0, 1, 0], [], []>} : vector<8x128xf32>, vector<128x128xf32>, vector<8x128xf32> -> vector<8x128xf32>
    %c0_i32 = arith.constant 0 : i32
    %6 = arith.cmpi eq, %arg1, %c0_i32 : i32
    %7 = arith.extui %6 : i1 to i32
    %c0_i32_2 = arith.constant 0 : i32
    %8 = arith.cmpi ne, %7, %c0_i32_2 : i32
    scf.if %8 {
      %c0_7 = arith.constant 0 : index
      %c0_8 = arith.constant 0 : index
      %15 = vector.load %arg7[%c0_7, %c0_8] : memref<8x128xf32, #tpu.memory_space<vmem>>, vector<8x128xf32>
      tpu.vector_store %arg7[%c0_7, %c0_8], %5 {strides = array<i32>} : memref<8x128xf32, #tpu.memory_space<vmem>>, vector<8x128xf32>,
    } else {
    }
    %c0_i32_3 = arith.constant 0 : i32
    %9 = arith.cmpi ne, %arg1, %c0_i32_3 : i32
    %10 = arith.extui %9 : i1 to i32
    %c0_i32_4 = arith.constant 0 : i32
    %11 = arith.cmpi ne, %10, %c0_i32_4 : i32
    scf.if %11 {
      %c0_7 = arith.constant 0 : index
      %c0_8 = arith.constant 0 : index
      %15 = vector.load %arg7[%c0_7, %c0_8] : memref<8x128xf32, #tpu.memory_space<vmem>>, vector<8x128xf32>
      %16 = arith.addf %15, %5 : vector<8x128xf32>
      %c0_9 = arith.constant 0 : index
      %c0_10 = arith.constant 0 : index
      %17 = vector.load %arg7[%c0_9, %c0_10] : memref<8x128xf32, #tpu.memory_space<vmem>>, vector<8x128xf32>
      tpu.vector_store %arg7[%c0_9, %c0_10], %16 {strides = array<i32>} : memref<8x128xf32, #tpu.memory_space<vmem>>, vector<8x128xf32>,
    } else {
    }
    %c0_i32_5 = arith.constant 0 : i32
    %12 = arith.cmpi eq, %arg1, %c0_i32_5 : i32
    %13 = arith.extui %12 : i1 to i32
    %c0_i32_6 = arith.constant 0 : i32
    %14 = arith.cmpi ne, %13, %c0_i32_6 : i32
    scf.if %14 {
      %c0_7 = arith.constant 0 : index
      %c0_8 = arith.constant 0 : index
      %15 = vector.load %arg7[%c0_7, %c0_8] : memref<8x128xf32, #tpu.memory_space<vmem>>, vector<8x128xf32>
      %cst_9 = arith.constant dense<0.000000e+00> : vector<128xf32>
      %16 = vector.multi_reduction <add>, %15, %cst_9 [0] : vector<8x128xf32> to vector<128xf32>
      %17 = vector.shape_cast %16 : vector<128xf32> to vector<1x128xf32>
      %cst_10 = arith.constant 1.250000e-01 : f32
      %18 = vector.broadcast %cst_10 : f32 to vector<1x128xf32>
      %19 = arith.mulf %17, %18 : vector<1x128xf32>
      %20 = arith.mulf %15, %15 : vector<8x128xf32>
      %cst_11 = arith.constant dense<0.000000e+00> : vector<128xf32>
      %21 = vector.multi_reduction <add>, %20, %cst_11 [0] : vector<8x128xf32> to vector<128xf32>
      %22 = vector.shape_cast %21 : vector<128xf32> to vector<1x128xf32>
      %cst_12 = arith.constant 1.250000e-01 : f32
      %23 = vector.broadcast %cst_12 : f32 to vector<1x128xf32>
      %24 = arith.mulf %22, %23 : vector<1x128xf32>
      %25 = arith.mulf %19, %19 : vector<1x128xf32>
      %26 = arith.subf %24, %25 : vector<1x128xf32>
      %cst_13 = arith.constant 0.000000e+00 : f32
      %27 = vector.broadcast %cst_13 : f32 to vector<1x128xf32>
      %28 = arith.maximumf %26, %27 : vector<1x128xf32>
      %c0_14 = arith.constant 0 : index
      %c0_15 = arith.constant 0 : index
      %29 = vector.load %arg4[%c0_14, %c0_15] : memref<1x128xf32, #tpu.memory_space<vmem>>, vector<1x128xf32>
      %cst_16 = arith.constant 9.99999974E-6 : f32
      %30 = vector.broadcast %cst_16 : f32 to vector<1x128xf32>
      %31 = arith.addf %28, %30 : vector<1x128xf32>
      %32 = math.rsqrt %31 : vector<1x128xf32>
      %33 = arith.mulf %29, %32 : vector<1x128xf32>
      %c0_17 = arith.constant 0 : index
      %c0_18 = arith.constant 0 : index
      %34 = vector.load %arg5[%c0_17, %c0_18] : memref<1x128xf32, #tpu.memory_space<vmem>>, vector<1x128xf32>
      %35 = arith.mulf %33, %19 : vector<1x128xf32>
      %36 = arith.subf %34, %35 : vector<1x128xf32>
      %37 = vector.broadcast %33 : vector<1x128xf32> to vector<8x128xf32>
      %38 = arith.mulf %15, %37 : vector<8x128xf32>
      %39 = vector.broadcast %36 : vector<1x128xf32> to vector<8x128xf32>
      %40 = arith.addf %38, %39 : vector<8x128xf32>
      %c0_19 = arith.constant 0 : index
      %41 = memref.load %arg6[%c0_19] : memref<1xf32, #tpu.memory_space<smem>>
      %cst_20 = arith.constant 0.000000e+00 : f32
      %42 = vector.broadcast %cst_20 : f32 to vector<8x128xf32>
      %43 = arith.cmpf ogt, %40, %42 : vector<8x128xf32>
      %44 = vector.broadcast %41 : f32 to vector<8x128xf32>
      %45 = arith.mulf %44, %40 : vector<8x128xf32>
      %46 = arith.select %43, %40, %45 : vector<8x128xi1>, vector<8x128xf32>
      %c0_21 = arith.constant 0 : index
      %c0_22 = arith.constant 0 : index
      %47 = vector.load %arg7[%c0_21, %c0_22] : memref<8x128xf32, #tpu.memory_space<vmem>>, vector<8x128xf32>
      tpu.vector_store %arg7[%c0_21, %c0_22], %46 {strides = array<i32>} : memref<8x128xf32, #tpu.memory_space<vmem>>, vector<8x128xf32>,
    } else {
    }
    return
  }
  func.func @transform_0(%arg0: i32, %arg1: i32) -> (i32, i32) {
    %c0_i32 = arith.constant 0 : i32
    %c0_i32_0 = arith.constant 0 : i32
    %c0_i32_1 = arith.constant 0 : i32
    return %c0_i32, %c0_i32_0 : i32, i32
  }
  func.func @transform_1(%arg0: i32, %arg1: i32) -> (i32, i32) {
    %c0_i32 = arith.constant 0 : i32
    return %arg0, %arg1 : i32, i32
  }
  func.func @transform_2(%arg0: i32, %arg1: i32) -> (i32, i32) {
    %c0_i32 = arith.constant 0 : i32
    %c0_i32_0 = arith.constant 0 : i32
    return %c0_i32, %arg0 : i32, i32
  }
  func.func @transform_3(%arg0: i32, %arg1: i32) -> (i32, i32) {
    %c0_i32 = arith.constant 0 : i32
    %c0_i32_0 = arith.constant 0 : i32
    return %c0_i32, %arg0 : i32, i32
  }
  func.func @transform_4(%arg0: i32, %arg1: i32) -> i32 {
    %c0_i32 = arith.constant 0 : i32
    %c0_i32_0 = arith.constant 0 : i32
    return %c0_i32 : i32
  }
  func.func @transform_5(%arg0: i32, %arg1: i32) -> (i32, i32) {
    %c0_i32 = arith.constant 0 : i32
    %c0_i32_0 = arith.constant 0 : i32
    return %c0_i32, %arg0 : i32, i32
  }
}

</mosaic_0001>

<llo_original>
// kernel: tpu_custom_call.1
$region0: #{tpu_custom_call.1}
  #allocation0 [shape = 'u32[]', space=smem, size = 0x4, offset = 0x4, fixed_abs, tag = 'smem constant byte address 0x4 - core index']
  #allocation1 [shape = 'u32[72,128]{1,0:T(1,128)}', space=vmem, size = 0x9000, scoped, tag = 'internal scratch']
  #allocation2 [shape = 'f32[1]{0:T(128)S(6)}', space=smem, size = 0x200, scoped, tag = 'scoped memory for tpu_custom_call.1']
  %s0 = inlined_call_operand.hbm [shape: f32[8,128], index: 0, kind: input, shape index: {}]
  %s1 = inlined_call_operand.hbm [shape: f32[128,128], index: 1, kind: input, shape index: {}]
  %s2 = inlined_call_operand.vmem [shape: f32[1,128], index: 2, kind: input, shape index: {}]
  %s3 = inlined_call_operand.vmem [shape: f32[1,128], index: 3, kind: input, shape index: {}]
  %s4 = inlined_call_operand.<no memory space> [shape: f32[1], index: 4, kind: input, shape index: {}]
  %s5 = inlined_call_operand.hbm [shape: f32[8,128], index: 5, kind: output, shape index: {}]
  %s6 = sld [smem:[#allocation0]]
  $region50: #{tpu_custom_call.1} parent=0
    _
  %s8 = ssub.s32 1, %s6
  %s9 = scalar_select 0, %s8, %s6
  %10 = sst [smem:[#allocation2]] %s4
  $region1: #{tpu_custom_call.1} parent=0
    #allocation3 [shape = 'u8[4096]{0}', space=vmem, size = 0x1000, scoped, tag = 'input window, operand 0, single buffered']
    #allocation4 [shape = 's32[1]{0}', space=sflag, size = 0x4, scoped, tag = 'scoped memory for tpu_custom_call.1']
    #allocation5 [shape = 's32[1]{0}', space=sflag, size = 0x4, scoped, tag = 'scoped memory for tpu_custom_call.1']
    #allocation6 [shape = 'u8[65536]{0}', space=vmem, size = 0x10000, scoped, tag = 'input window, operand 1, single buffered']
    #allocation7 [shape = 's32[1]{0}', space=sflag, size = 0x4, scoped, tag = 'scoped memory for tpu_custom_call.1']
    #allocation8 [shape = 'u8[4096]{0}', space=vmem, size = 0x1000, scoped, tag = 'output window, operand 0, single buffered']
    %11 = vsyncpa [#allocation4], 0
    %12 = vsyncpa [#allocation7], 0
    %13 = vsyncpa [#allocation5], 0
    // Predicated region
    $region2: #{tpu_custom_call.1} parent=1 // pred_check
      _
    $region3: #{tpu_custom_call.1} parent=1 // pred_check_branch
      %15 = sbr.rel (0) target = $region5
    $region4: #{tpu_custom_call.1} parent=1 // pred_region
      %17 = vsyncadd [#allocation4], 0
      %s19 = sshll.u32 %s0, 4
      %s20 = int_to_ptr.hbm [resolvable:$true] %s19
      %s21 = sshll.u32 [#allocation3], 4
      %s22 = int_to_ptr.vmem [resolvable:$true] %s21
      %24 = dma.hbm_to_vmem [thread:$0]  %s20, 128, %s22, [#allocation4]
    $region5: #{tpu_custom_call.1} parent=1 // pred_fallthru
      _
    // Predicated region
    $region6: #{tpu_custom_call.1} parent=1 // pred_check
      _
    $region7: #{tpu_custom_call.1} parent=1 // pred_check_branch
      %26 = sbr.rel (0) target = $region9
    $region8: #{tpu_custom_call.1} parent=1 // pred_region
      %28 = vsyncadd [#allocation7], 0
      %s29 = sshll.u32 %s1, 4
      %s30 = int_to_ptr.hbm [resolvable:$true] %s29
      %s31 = sshll.u32 [#allocation6], 4
      %s32 = int_to_ptr.vmem [resolvable:$true] %s31
      %37 = dma.hbm_to_vmem [thread:$0]  %s30, 2048, %s32, [#allocation7], 128, 128, 8
    $region9: #{tpu_custom_call.1} parent=1 // pred_fallthru
      _
    // Predicated region
    $region10: #{tpu_custom_call.1} parent=1 // pred_check
      _
    $region11: #{tpu_custom_call.1} parent=1 // pred_check_branch
      %39 = sbr.rel (0) target = $region13
    $region12: #{tpu_custom_call.1} parent=1 // pred_region
      _
    $region13: #{tpu_custom_call.1} parent=1 // pred_fallthru
      _
    // Predicated region
    $region14: #{tpu_custom_call.1} parent=1 // pred_check
      _
    $region15: #{tpu_custom_call.1} parent=1 // pred_check_branch
      %41 = sbr.rel (0) target = $region17
    $region16: #{tpu_custom_call.1} parent=1 // pred_region
      _
    $region17: #{tpu_custom_call.1} parent=1 // pred_fallthru
      _
    // Predicated region
    $region18: #{tpu_custom_call.1} parent=1 // pred_check
      _
    $region19: #{tpu_custom_call.1} parent=1 // pred_check_branch
      %43 = sbr.rel (0) target = $region21
    $region20: #{tpu_custom_call.1} parent=1 // pred_region
      _
    $region21: #{tpu_custom_call.1} parent=1 // pred_fallthru
      _
    // Predicated region
    $region22: #{tpu_custom_call.1} parent=1 // pred_check
      _
    $region23: #{tpu_custom_call.1} parent=1 // pred_check_branch
      %45 = sbr.rel (0) target = $region25
    $region24: #{tpu_custom_call.1} parent=1 // pred_region
      %47 = dma.done [#allocation4], 128
    $region25: #{tpu_custom_call.1} parent=1 // pred_fallthru
      _
    // Predicated region
    $region26: #{tpu_custom_call.1} parent=1 // pred_check
      _
    $region27: #{tpu_custom_call.1} parent=1 // pred_check_branch
      %49 = sbr.rel (0) target = $region29
    $region28: #{tpu_custom_call.1} parent=1 // pred_region
      %51 = dma.done [#allocation7], 2048
    $region29: #{tpu_custom_call.1} parent=1 // pred_fallthru
      _
    %s52 = smul.u32 0, 128
    %s53 = sshra.s32 %s52, 7
    %s54 = sand.u32 %s52, 127
    %s55 = scalar_lea.vmem [#allocation3], %s53
    %v56 = vld [vmem:[%s55] sm:$0xff]
    %v57 = vld [vmem:[#allocation6] sm:$0xff]
    %v58 = vld [vmem:[#allocation6 + $0x8] sm:$0xff]
    %v59 = vld [vmem:[#allocation6 + $0x10] sm:$0xff]
    %v60 = vld [vmem:[#allocation6 + $0x18] sm:$0xff]
    %v61 = vld [vmem:[#allocation6 + $0x20] sm:$0xff]
    %v62 = vld [vmem:[#allocation6 + $0x28] sm:$0xff]
    %v63 = vld [vmem:[#allocation6 + $0x30] sm:$0xff]
    %v64 = vld [vmem:[#allocation6 + $0x38] sm:$0xff]
    %v65 = vld [vmem:[#allocation6 + $0x40] sm:$0xff]
    %v66 = vld [vmem:[#allocation6 + $0x48] sm:$0xff]
    %v67 = vld [vmem:[#allocation6 + $0x50] sm:$0xff]
    %v68 = vld [vmem:[#allocation6 + $0x58] sm:$0xff]
    %v69 = vld [vmem:[#allocation6 + $0x60] sm:$0xff]
    %v70 = vld [vmem:[#allocation6 + $0x68] sm:$0xff]
    %v71 = vld [vmem:[#allocation6 + $0x70] sm:$0xff]
    %v72 = vld [vmem:[#allocation6 + $0x78] sm:$0xff]
    %73 = vmatpush.xpose.msra.mxu0 %v72
    %74 = vmatpush.xpose.msra.mxu0 %v71
    %75 = vmatpush.xpose.msra.mxu0 %v70
    %76 = vmatpush.xpose.msra.mxu0 %v69
    %77 = vmatpush.xpose.msra.mxu0 %v68
    %78 = vmatpush.xpose.msra.mxu0 %v67
    %79 = vmatpush.xpose.msra.mxu0 %v66
    %80 = vmatpush.xpose.msra.mxu0 %v65
    %81 = vmatpush.xpose.msra.mxu0 %v64
    %82 = vmatpush.xpose.msra.mxu0 %v63
    %83 = vmatpush.xpose.msra.mxu0 %v62
    %84 = vmatpush.xpose.msra.mxu0 %v61
    %85 = vmatpush.xpose.msra.mxu0 %v60
    %86 = vmatpush.xpose.msra.mxu0 %v59
    %87 = vmatpush.xpose.msra.mxu0 %v58
    %88 = vmatpush.xpose.msra.mxu0 %v57
    %89 = vmatmul.f32.gmra.mxu0 %v56
    %v90 = vpop.f32.mrf.mxu0
    %v91 = vadd.f32 0.0, %v90
    %92 = vdwg.mxu0
    %p93 = scmp.eq.s32.totalorder 0, 0
    // Predicated region
    $region30: #{tpu_custom_call.1} parent=1 // pred_check
      %p94 = pneg %p93
    $region31: #{tpu_custom_call.1} parent=1 // pred_check_branch
      %96 = sbr.rel (%p94) target = $region33
    $region32: #{tpu_custom_call.1} parent=1 // pred_region
      %97 = vst [vmem:[#allocation8] sm:$0xff] %v91
    $region33: #{tpu_custom_call.1} parent=1 // pred_fallthru
      _
    %p98 = scmp.ne.s32.totalorder 0, 0
    // Predicated region
    $region34: #{tpu_custom_call.1} parent=1 // pred_check
      %p99 = pneg %p98
    $region35: #{tpu_custom_call.1} parent=1 // pred_check_branch
      %101 = sbr.rel (%p99) target = $region37
    $region36: #{tpu_custom_call.1} parent=1 // pred_region
      %v102 = vld [vmem:[#allocation8] sm:$0xff]
      %v103 = vadd.f32 %v102, %v91
      %104 = vst [vmem:[#allocation8] sm:$0xff] %v103
    $region37: #{tpu_custom_call.1} parent=1 // pred_fallthru
      _
    // Predicated region
    $region38: #{tpu_custom_call.1} parent=1 // pred_check
      %p105 = pneg %p93
    $region39: #{tpu_custom_call.1} parent=1 // pred_check_branch
      %107 = sbr.rel (%p105) target = $region41
    $region40: #{tpu_custom_call.1} parent=1 // pred_region
      %v108 = vld [vmem:[#allocation8] sm:$0xff]
      %v109 = vrot.slane %v108, 4
      %v110 = vadd.f32 %v108, %v109
      %v111 = vrot.slane %v110, 2
      %v112 = vadd.f32 %v110, %v111
      %v113 = vrot.slane %v112, 1
      %v114 = vadd.f32 %v112, %v113
      %v115 = vmul.f32 %v114, 0.125
      %v116 = vmul.f32 %v108, %v108
      %v117 = vrot.slane %v116, 4
      %v118 = vadd.f32 %v116, %v117
      %v119 = vrot.slane %v118, 2
      %v120 = vadd.f32 %v118, %v119
      %v121 = vrot.slane %v120, 1
      %v122 = vadd.f32 %v120, %v121
      %v123 = vmul.f32 %v122, 0.125
      %v124 = vmul.f32 %v115, %v115
      %v125 = vsub.f32 %v123, %v124
      %v126 = vmax.f32 %v125, 0.0
      %v127 = vld [vmem:[%s2] sm:$0x1]
      %v128 = vadd.f32 %v126, 1e-05
      %v129 = vrsqrt.pop %v128
      %v130 = vmul.f32 %v129, %v128
      %v131 = vmul.f32 %v130, %v129
      %v132 = vmul.f32 0.5, %v131
      %v133 = vsub.f32 1.5, %v132
      %v134 = vmul.f32 %v129, %v133
      %vm135 = vweird.f32 %v128
      %vm136 = vweird.f32 %v129
      %vm137 = vmor %vm135, %vm136
      %v138 = vsel %vm137, %v129, %v134
      %v139 = vmul.f32 %v127, %v138
      %v140 = vld [vmem:[%s3] sm:$0x1]
      %v141 = vmul.f32 %v139, %v115
      %v142 = vsub.f32 %v140, %v141
      %v144 = vperm.slane %v139, 0
      %v146 = vmul.f32 %v108, %v144
      %v148 = vperm.slane %v142, 0
      %v150 = vadd.f32 %v146, %v148
      %s151 = sld [smem:[#allocation2]]
      %vm152 = vcmp.gt.f32.partialorder %v150, 0.0
      %v153 = vstv %s151
      %v154 = vmul.f32 %v153, %v150
      %v155 = vsel %vm152, %v150, %v154
      %156 = vst [vmem:[#allocation8] sm:$0xff] %v155
    $region41: #{tpu_custom_call.1} parent=1 // pred_fallthru
      _
    // Predicated region
    $region42: #{tpu_custom_call.1} parent=1 // pred_check
      _
    $region43: #{tpu_custom_call.1} parent=1 // pred_check_branch
      %158 = sbr.rel (0) target = $region45
    $region44: #{tpu_custom_call.1} parent=1 // pred_region
      %160 = vsyncadd [#allocation5], 0
      %s162 = sshll.u32 [#allocation8], 4
      %s163 = int_to_ptr.vmem [resolvable:$true] %s162
      %s164 = sshll.u32 %s5, 4
      %s165 = int_to_ptr.hbm [resolvable:$true] %s164
      %167 = dma.vmem_to_hbm [thread:$0]  %s163, 128, %s165, [#allocation5]
    $region45: #{tpu_custom_call.1} parent=1 // pred_fallthru
      _
    // Predicated region
    $region46: #{tpu_custom_call.1} parent=1 // pred_check
      _
    $region47: #{tpu_custom_call.1} parent=1 // pred_check_branch
      %169 = sbr.rel (0) target = $region49
    $region48: #{tpu_custom_call.1} parent=1 // pred_region
      %171 = dma.done [#allocation5], 128
    $region49: #{tpu_custom_call.1} parent=1 // pred_fallthru
      _
    %172 = vsyncpa [#allocation4], 1
    %173 = vsyncpa [#allocation7], 1
    %174 = vsyncpa [#allocation5], 1

</llo_original>
